<compile_context>
chip_gen: v7x
topology: tpu7x:2x2x1
jax: 0.10.0
libtpu: 0.0.40
codegen_flags: <defaults>
</compile_context>

<pallas_src>
import functools

import jax
import jax.numpy as jnp
from jax import lax
from jax.experimental import pallas as pl
from jax.experimental.pallas import tpu as pltpu


def _cross_attn_kernel(x_ref, wqkv_ref, bqkv_ref, bp_ref, o_ref, *, b, n, c_pad):
    """One block of `b` batches: x (b*n, C), fused QKV (C, 3*C_pad)."""
    cdt = wqkv_ref.dtype                                   # MXU compute dtype
    x = x_ref[...]                                         # (b*n, C)

    # Fused QKV projection.  Scale is folded into the q slice; the output
    # projection (Wp, bp-less part) is folded into the v slice.
    qkv = jnp.dot(x, wqkv_ref[...],
                  preferred_element_type=jnp.float32) + bqkv_ref[...]

    # 128-aligned lane slices -> no relayout; n % 8 == 0 keeps reshapes free.
    q = qkv[:, :c_pad].astype(cdt).reshape(b, n, c_pad)            # scaled q
    k = qkv[:, c_pad:2 * c_pad].astype(cdt).reshape(b, n, c_pad)
    v = qkv[:, 2 * c_pad:].astype(cdt).reshape(b, n, c_pad)        # v @ Wp folded

    # attn = (q*scale) @ k^T  -- NO softmax (matches the reference module).
    attn = lax.dot_general(
        q, k, dimension_numbers=(((2,), (2,)), ((0,), (0,))),
        preferred_element_type=jnp.float32)                        # (b, n, n)
    # attn_drop: identity (eval mode)

    ctx = lax.dot_general(
        attn.astype(cdt), v, dimension_numbers=(((2,), (1,)), ((0,), (0,))),
        preferred_element_type=jnp.float32)                        # (b, n, c_pad)

    # Output projection already folded into v; only the bias remains.
    y = ctx.reshape(b * n, c_pad) + bp_ref[...]
    o_ref[...] = y.astype(o_ref.dtype)                             # lane-dense store


def fuse_and_pad_params(params, C, *, num_heads=1, qk_scale=None, lane=128,
                        dtype=jnp.bfloat16):
    """One-time param prep.

    - qk scale folded into the q weight/bias (exact; scale uses the ORIGINAL C).
    - output projection folded into V:  v' = x @ (Wv Wp) + bv Wp   (exact).
    - weights padded only on the OUTPUT (lane) side to C_pad = 128 and cast to
      `dtype` (bf16 by default: MXU-native, halves the dominant weight DMA).
    - biases kept f32 (added after f32-accumulated dots).
    """
    head_dim = C // num_heads
    scale = qk_scale if qk_scale is not None else head_dim ** (-0.5)
    C_pad = ((C + lane - 1) // lane) * lane

    def pad_out(w):   # (C, C) -> (C, C_pad): pad output columns only
        return jnp.pad(w, ((0, 0), (0, C_pad - w.shape[1])))

    def pad_b(bv):    # (1, C) -> (1, C_pad)
        return jnp.pad(bv, ((0, 0), (0, C_pad - bv.shape[1])))

    # Fold Wp into Wv / bv at full f32 precision (avoid TPU default-precision
    # matmul rounding leaking into the "exact" fold).
    hi = lax.Precision.HIGHEST
    wv_p = jnp.matmul(params["wv"], params["wp"], precision=hi)   # (C, C)
    bv_p = jnp.matmul(params["bv"], params["wp"], precision=hi)   # (1, C)

    wqkv = jnp.concatenate(
        [pad_out(params["wq"] * scale), pad_out(params["wk"]), pad_out(wv_p)],
        axis=1).astype(dtype)                                     # (C, 3*C_pad)
    bqkv = jnp.concatenate(
        [pad_b(params["bq"] * scale), pad_b(params["bk"]), pad_b(bv_p)],
        axis=1).astype(jnp.float32)                               # (1, 3*C_pad)
    bp = pad_b(params["bp"]).astype(jnp.float32)                  # (1, C_pad)
    return dict(wqkv=wqkv, bqkv=bqkv, bp=bp, C_pad=C_pad)


def cross_attention(x, fused, *, num_heads=1, batch_grid=False):
    """x: [B, N, C].  fused: output of fuse_and_pad_params.

    batch_grid=False : single VMEM-resident block, grid=(1,)  (v5e / v6e).
    batch_grid=True  : grid=(B,) parallel batch axis -> shards across the two
                       TensorCores of a v7x chip and halves per-core footprint.
    """
    assert num_heads == 1, "kernel implements the module default num_heads=1"
    B, N, C = x.shape
    assert N % 8 == 0, "N must be a multiple of the 8-row sublane tile"
    C_pad = fused["C_pad"]
    BN = B * N

    cdt = fused["wqkv"].dtype
    x2d = x.reshape(BN, C).astype(cdt)        # unpadded input, lane dim = C

    # --- VMEM budget guard for the single-block design -----------------------
    isz = x2d.dtype.itemsize
    weight_bytes = (fused["wqkv"].size * fused["wqkv"].dtype.itemsize
                    + fused["bqkv"].size * fused["bqkv"].dtype.itemsize
                    + fused["bp"].size * fused["bp"].dtype.itemsize)
    live_bytes = (2 * BN * C * isz            # double-buffered x block
                  + 2 * BN * C_pad * 4        # double-buffered out block (f32)
                  + 2 * weight_bytes          # double-buffered weights
                  + BN * 3 * C_pad * 4        # qkv intermediate (f32)
                  + 3 * BN * C_pad * isz      # q/k/v compute-dtype copies
                  + B * N * N * 4             # attn (f32) -- quadratic in N
                  + BN * C_pad * 4)           # ctx (f32)
    assert live_bytes < 16 * 1024 * 1024, (
        "block exceeds the most conservative scoped-VMEM default (16 MiB, v5e);"
        " enable batch_grid / N-tiling or raise vmem_limit_bytes")

    if batch_grid:
        # v7x: batch is embarrassingly parallel -> one batch per grid step.
        grid, b_per, sem = (B,), 1, ("parallel",)
        x_spec = pl.BlockSpec((N, C), lambda i: (i, 0))
        o_spec = pl.BlockSpec((N, C_pad), lambda i: (i, 0))
    else:
        # v5e/v6e: single TensorCore -> one block, no per-step grid overhead.
        grid, b_per, sem = (1,), B, ("arbitrary",)
        x_spec = pl.BlockSpec((BN, C), lambda i: (0, 0))
        o_spec = pl.BlockSpec((BN, C_pad), lambda i: (0, 0))

    flops = (2 * BN * C * 3 * C_pad           # fused QKV matmul
             + 2 * B * N * N * C_pad          # q @ k^T
             + 2 * B * N * N * C_pad)         # attn @ v'
    bytes_accessed = (BN * C * isz + weight_bytes + BN * C_pad * 4)

    kernel = functools.partial(_cross_attn_kernel, b=b_per, n=N, c_pad=C_pad)

    out2d = pl.pallas_call(
        kernel,
        out_shape=jax.ShapeDtypeStruct((BN, C_pad), x.dtype),
        grid_spec=pltpu.PrefetchScalarGridSpec(
            num_scalar_prefetch=0,
            grid=grid,
            in_specs=[
                x_spec,                                                 # x
                pl.BlockSpec((C, 3 * C_pad), lambda i: (0, 0)),         # wqkv
                pl.BlockSpec((1, 3 * C_pad), lambda i: (0, 0)),         # bqkv
                pl.BlockSpec((1, C_pad), lambda i: (0, 0)),             # bp
            ],
            out_specs=o_spec,
        ),
        compiler_params=pltpu.CompilerParams(dimension_semantics=sem),
        cost_estimate=pl.CostEstimate(flops=flops, transcendentals=0,
                                      bytes_accessed=bytes_accessed),
    )(x2d, fused["wqkv"], fused["bqkv"], fused["bp"])

    return out2d[:, :C].reshape(B, N, C)


def init_params(key, C):
    """Deterministic parameter init. Weights stored as (in, out) = W^T."""
    ks = jax.random.split(key, 8)
    s = 1.0 / jnp.sqrt(C)

    def lin(kw, kb):
        w = jax.random.uniform(kw, (C, C), jnp.float32, -s, s)   # already W^T
        b = jax.random.uniform(kb, (1, C), jnp.float32, -s, s)
        return w, b

    wq, bq = lin(ks[0], ks[1])
    wk, bk = lin(ks[2], ks[3])
    wv, bv = lin(ks[4], ks[5])
    wp, bp = lin(ks[6], ks[7])
    return dict(wq=wq, bq=bq, wk=wk, bk=bk, wv=wv, bv=bv, wp=wp, bp=bp)


def cross_attention_ref(x, p, *, scale):
    """Pure-JAX reference mirroring the PyTorch forward (eval mode)."""
    q = x @ p["wq"] + p["bq"]
    k = x @ p["wk"] + p["bk"]
    v = x @ p["wv"] + p["bv"]
    attn = jnp.einsum("bnc,bmc->bnm", q, k) * scale   # no softmax (as in module)
    y = jnp.einsum("bnm,bmc->bnc", attn, v)
    return y @ p["wp"] + p["bp"]


if __name__ == "__main__":
    key = jax.random.PRNGKey(0)
    kx, kp = jax.random.split(key)

    B, N, C = 2, 8, 32          # batch=2, tokens=8, endmember=32
    x = jax.random.normal(kx, (B, N, C), jnp.float32)
    params = init_params(kp, C)
    ref = cross_attention_ref(x, params, scale=C ** (-0.5))

    # 1) f32 weights: tight semantic check (Wp->Wv fold is exact up to f32
    #    rounding order).
    fused_f32 = fuse_and_pad_params(params, C, dtype=jnp.float32)
    out_f32 = jax.block_until_ready(cross_attention(x, fused_f32))
    assert out_f32.shape == (B, N, C)
    assert jnp.allclose(out_f32, ref, atol=5e-4, rtol=5e-4)

    # 2) bf16 weights/activations (perf default): f32 accumulation, looser
    #    tolerance since the un-normalized (no-softmax) scores chain through
    #    three matmuls.
    fused_bf16 = fuse_and_pad_params(params, C)            # dtype=bfloat16
    out_bf16 = jax.block_until_ready(cross_attention(x, fused_bf16))
    assert out_bf16.shape == (B, N, C)
    assert jnp.allclose(out_bf16, ref, atol=1e-1, rtol=1e-1)

    # 3) v7x-style parallel batch grid: same math, sharded over TensorCores.
    out_bgrid = jax.block_until_ready(
        cross_attention(x, fused_bf16, batch_grid=True))
    assert jnp.allclose(out_bgrid, out_bf16, atol=1e-3, rtol=1e-3)

    print("KERNEL_OK")
</pallas_src>

<mosaic_0001>
module attributes {stable_mosaic.version = 11 : i64} {
  func.func @_cross_attn_kernel(%arg0: i32, %arg1: memref<16x32xf32, #tpu.memory_space<vmem>>, %arg2: memref<32x384xf32, #tpu.memory_space<vmem>>, %arg3: memref<1x384xf32, #tpu.memory_space<vmem>>, %arg4: memref<1x128xf32, #tpu.memory_space<vmem>>, %arg5: memref<16x128xf32, #tpu.memory_space<vmem>>) attributes {dimension_semantics = [#tpu.dimension_semantics<arbitrary>], iteration_bounds = array<i64: 1>, scalar_prefetch = 0 : i64, scratch_operands = 0 : i64, tpu.core_type = #tpu.core_type<tc>, window_params = [{pipeline_mode = #tpu.pipeline_mode<synchronous>, transform_indices = @transform_0, window_bounds = array<i64: 16, 32>}, {pipeline_mode = #tpu.pipeline_mode<synchronous>, transform_indices = @transform_1, window_bounds = array<i64: 32, 384>}, {pipeline_mode = #tpu.pipeline_mode<synchronous>, transform_indices = @transform_2, window_bounds = array<i64: 1, 384>}, {pipeline_mode = #tpu.pipeline_mode<synchronous>, transform_indices = @transform_3, window_bounds = array<i64: 1, 128>}, {pipeline_mode = #tpu.pipeline_mode<synchronous>, transform_indices = @transform_4, window_bounds = array<i64: 16, 128>}]} {
    %c0 = arith.constant 0 : index
    %c0_0 = arith.constant 0 : index
    %0 = vector.load %arg1[%c0, %c0_0] : memref<16x32xf32, #tpu.memory_space<vmem>>, vector<16x32xf32>
    %c0_1 = arith.constant 0 : index
    %c0_2 = arith.constant 0 : index
    %1 = vector.load %arg2[%c0_1, %c0_2] : memref<32x384xf32, #tpu.memory_space<vmem>>, vector<32x384xf32>
    %cst = arith.constant dense<0.000000e+00> : vector<16x384xf32>
    %2 = tpu.matmul %0, %1, %cst {dimension_numbers = #tpu.dot_dimension_numbers<[1], [0], [0], [1], [0, 0, 1, 1], [], []>} : vector<16x32xf32>, vector<32x384xf32>, vector<16x384xf32> -> vector<16x384xf32>
    %c0_3 = arith.constant 0 : index
    %c0_4 = arith.constant 0 : index
    %3 = vector.load %arg3[%c0_3, %c0_4] : memref<1x384xf32, #tpu.memory_space<vmem>>, vector<1x384xf32>
    %4 = vector.broadcast %3 : vector<1x384xf32> to vector<16x384xf32>
    %5 = arith.addf %2, %4 : vector<16x384xf32>
    %6 = vector.extract_strided_slice %5 {offsets = [0, 0], sizes = [16, 128], strides = [1, 1]} : vector<16x384xf32> to vector<16x128xf32>
    %7 = vector.shape_cast %6 : vector<16x128xf32> to vector<2x8x128xf32>
    %8 = vector.extract_strided_slice %5 {offsets = [0, 128], sizes = [16, 128], strides = [1, 1]} : vector<16x384xf32> to vector<16x128xf32>
    %9 = vector.shape_cast %8 : vector<16x128xf32> to vector<2x8x128xf32>
    %10 = vector.extract_strided_slice %5 {offsets = [0, 256], sizes = [16, 128], strides = [1, 1]} : vector<16x384xf32> to vector<16x128xf32>
    %11 = vector.shape_cast %10 : vector<16x128xf32> to vector<2x8x128xf32>
    %cst_5 = arith.constant dense<0.000000e+00> : vector<2x8x8xf32>
    %12 = tpu.matmul %7, %9, %cst_5 {dimension_numbers = #tpu.dot_dimension_numbers<[2], [2], [1], [1], [0, 0, 0, 1, 1, 1], [0], [0]>} : vector<2x8x128xf32>, vector<2x8x128xf32>, vector<2x8x8xf32> -> vector<2x8x8xf32>
    %cst_6 = arith.constant dense<0.000000e+00> : vector<2x8x128xf32>
    %13 = tpu.matmul %12, %11, %cst_6 {dimension_numbers = #tpu.dot_dimension_numbers<[2], [1], [1], [2], [0, 0, 0, 1, 1, 2], [0], [0]>} : vector<2x8x8xf32>, vector<2x8x128xf32>, vector<2x8x128xf32> -> vector<2x8x128xf32>
    %14 = vector.shape_cast %13 : vector<2x8x128xf32> to vector<16x128xf32>
    %c0_7 = arith.constant 0 : index
    %c0_8 = arith.constant 0 : index
    %15 = vector.load %arg4[%c0_7, %c0_8] : memref<1x128xf32, #tpu.memory_space<vmem>>, vector<1x128xf32>
    %16 = vector.broadcast %15 : vector<1x128xf32> to vector<16x128xf32>
    %17 = arith.addf %14, %16 : vector<16x128xf32>
    %c0_9 = arith.constant 0 : index
    %c0_10 = arith.constant 0 : index
    %18 = vector.load %arg5[%c0_9, %c0_10] : memref<16x128xf32, #tpu.memory_space<vmem>>, vector<16x128xf32>
    tpu.vector_store %arg5[%c0_9, %c0_10], %17 {strides = array<i32>} : memref<16x128xf32, #tpu.memory_space<vmem>>, vector<16x128xf32>,
    return
  }
  func.func @transform_0(%arg0: i32) -> (i32, i32) {
    %c0_i32 = arith.constant 0 : i32
    %c0_i32_0 = arith.constant 0 : i32
    %c0_i32_1 = arith.constant 0 : i32
    return %c0_i32, %c0_i32_0 : i32, i32
  }
  func.func @transform_1(%arg0: i32) -> (i32, i32) {
    %c0_i32 = arith.constant 0 : i32
    %c0_i32_0 = arith.constant 0 : i32
    %c0_i32_1 = arith.constant 0 : i32
    return %c0_i32, %c0_i32_0 : i32, i32
  }
  func.func @transform_2(%arg0: i32) -> (i32, i32) {
    %c0_i32 = arith.constant 0 : i32
    %c0_i32_0 = arith.constant 0 : i32
    %c0_i32_1 = arith.constant 0 : i32
    return %c0_i32, %c0_i32_0 : i32, i32
  }
  func.func @transform_3(%arg0: i32) -> (i32, i32) {
    %c0_i32 = arith.constant 0 : i32
    %c0_i32_0 = arith.constant 0 : i32
    %c0_i32_1 = arith.constant 0 : i32
    return %c0_i32, %c0_i32_0 : i32, i32
  }
  func.func @transform_4(%arg0: i32) -> (i32, i32) {
    %c0_i32 = arith.constant 0 : i32
    %c0_i32_0 = arith.constant 0 : i32
    %c0_i32_1 = arith.constant 0 : i32
    return %c0_i32, %c0_i32_0 : i32, i32
  }
}

</mosaic_0001>

<llo_original>
// kernel: tpu_custom_call.1
$region0: #{tpu_custom_call.1}
  #allocation0 [shape = 'u32[]', space=smem, size = 0x4, offset = 0x4, fixed_abs, tag = 'smem constant byte address 0x4 - core index']
  #allocation1 [shape = 'u32[144,128]{1,0:T(1,128)}', space=vmem, size = 0x12000, scoped, tag = 'internal scratch']
  %s0 = inlined_call_operand.hbm [shape: f32[16,32], index: 0, kind: input, shape index: {}]
  %s1 = inlined_call_operand.hbm [shape: f32[32,384], index: 1, kind: input, shape index: {}]
  %s2 = inlined_call_operand.vmem [shape: f32[1,384], index: 2, kind: input, shape index: {}]
  %s3 = inlined_call_operand.vmem [shape: f32[1,128], index: 3, kind: input, shape index: {}]
  %s4 = inlined_call_operand.hbm [shape: f32[16,128], index: 4, kind: output, shape index: {}]
  %s5 = sld [smem:[#allocation0]]
  $region34: #{tpu_custom_call.1} parent=0
    _
  %s7 = ssub.s32 1, %s5
  %s8 = scalar_select 0, %s7, %s5
  $region1: #{tpu_custom_call.1} parent=0
    #allocation2 [shape = 'u8[8192]{0}', space=vmem, size = 0x2000, scoped, tag = 'input window, operand 0, single buffered']
    #allocation3 [shape = 's32[1]{0}', space=sflag, size = 0x4, scoped, tag = 'scoped memory for tpu_custom_call.1']
    #allocation4 [shape = 's32[1]{0}', space=sflag, size = 0x4, scoped, tag = 'scoped memory for tpu_custom_call.1']
    #allocation5 [shape = 'u8[49152]{0}', space=vmem, size = 0xc000, scoped, tag = 'input window, operand 1, single buffered']
    #allocation6 [shape = 's32[1]{0}', space=sflag, size = 0x4, scoped, tag = 'scoped memory for tpu_custom_call.1']
    #allocation7 [shape = 'u8[8192]{0}', space=vmem, size = 0x2000, scoped, tag = 'output window, operand 0, single buffered']
    %9 = vsyncpa [#allocation3], 0
    %10 = vsyncpa [#allocation6], 0
    %11 = vsyncpa [#allocation4], 0
    // Predicated region
    $region2: #{tpu_custom_call.1} parent=1 // pred_check
      _
    $region3: #{tpu_custom_call.1} parent=1 // pred_check_branch
      %13 = sbr.rel (0) target = $region5
    $region4: #{tpu_custom_call.1} parent=1 // pred_region
      %s15 = ssub.s32 256, 256
      %16 = vsyncadd [#allocation3], %s15
      %s17 = sshll.u32 [#allocation2], 4
      %s18 = int_to_ptr.vmem [resolvable:$true] %s17
      %23 = dma.hbm_to_vmem [thread:$0]  %s0, 256, %s18, [#allocation3], 128, 128, 8
    $region5: #{tpu_custom_call.1} parent=1 // pred_fallthru
      _
    // Predicated region
    $region6: #{tpu_custom_call.1} parent=1 // pred_check
      _
    $region7: #{tpu_custom_call.1} parent=1 // pred_check_branch
      %25 = sbr.rel (0) target = $region9
    $region8: #{tpu_custom_call.1} parent=1 // pred_region
      %s27 = ssub.s32 1536, 1536
      %28 = vsyncadd [#allocation6], %s27
      %s29 = sshll.u32 [#allocation5], 4
      %s30 = int_to_ptr.vmem [resolvable:$true] %s29
      %35 = dma.hbm_to_vmem [thread:$0]  %s1, 1536, %s30, [#allocation6], 384, 384, 24
    $region9: #{tpu_custom_call.1} parent=1 // pred_fallthru
      _
    // Predicated region
    $region10: #{tpu_custom_call.1} parent=1 // pred_check
      _
    $region11: #{tpu_custom_call.1} parent=1 // pred_check_branch
      %37 = sbr.rel (0) target = $region13
    $region12: #{tpu_custom_call.1} parent=1 // pred_region
      _
    $region13: #{tpu_custom_call.1} parent=1 // pred_fallthru
      _
    // Predicated region
    $region14: #{tpu_custom_call.1} parent=1 // pred_check
      _
    $region15: #{tpu_custom_call.1} parent=1 // pred_check_branch
      %39 = sbr.rel (0) target = $region17
    $region16: #{tpu_custom_call.1} parent=1 // pred_region
      _
    $region17: #{tpu_custom_call.1} parent=1 // pred_fallthru
      _
    // Predicated region
    $region18: #{tpu_custom_call.1} parent=1 // pred_check
      _
    $region19: #{tpu_custom_call.1} parent=1 // pred_check_branch
      %41 = sbr.rel (0) target = $region21
    $region20: #{tpu_custom_call.1} parent=1 // pred_region
      %42 = dma.done [#allocation3], 256
    $region21: #{tpu_custom_call.1} parent=1 // pred_fallthru
      _
    // Predicated region
    $region22: #{tpu_custom_call.1} parent=1 // pred_check
      _
    $region23: #{tpu_custom_call.1} parent=1 // pred_check_branch
      %44 = sbr.rel (0) target = $region25
    $region24: #{tpu_custom_call.1} parent=1 // pred_region
      %45 = dma.done [#allocation6], 1536
    $region25: #{tpu_custom_call.1} parent=1 // pred_fallthru
      _
    %v46 = vld [vmem:[#allocation2] sm:$0xff]
    %v47 = vld [vmem:[#allocation2 + $0x8] sm:$0xff]
    %v48 = vld [vmem:[#allocation5] sm:$0xff]
    %v49 = vld [vmem:[#allocation5 + $0x8] sm:$0xff]
    %v50 = vld [vmem:[#allocation5 + $0x10] sm:$0xff]
    %v51 = vld [vmem:[#allocation5 + $0x18] sm:$0xff]
    %v52 = vld [vmem:[#allocation5 + $0x20] sm:$0xff]
    %v53 = vld [vmem:[#allocation5 + $0x28] sm:$0xff]
    %v54 = vld [vmem:[#allocation5 + $0x30] sm:$0xff]
    %v55 = vld [vmem:[#allocation5 + $0x38] sm:$0xff]
    %v56 = vld [vmem:[#allocation5 + $0x40] sm:$0xff]
    %v57 = vld [vmem:[#allocation5 + $0x48] sm:$0xff]
    %v58 = vld [vmem:[#allocation5 + $0x50] sm:$0xff]
    %v59 = vld [vmem:[#allocation5 + $0x58] sm:$0xff]
    %v60 = vld [vmem:[%s2] sm:$0x7]
    %v62 = vlaneseq
    %v63 = vshrl.u32 %v62, 7
    %v64 = vsub.s32 0, %v63
    %v65 = vrot.slane %v60, %v64
    %v66 = vlaneseq
    %v67 = vshrl.u32 %v66, 7
    %v68 = vsub.s32 1, %v67
    %v69 = vrot.slane %v60, %v68
    %v70 = vlaneseq
    %v71 = vshrl.u32 %v70, 7
    %v72 = vsub.s32 2, %v71
    %v73 = vrot.slane %v60, %v72
    %vm77 = vcmask 261120
    %v79 = vsel %vm77, %v46, 0
    %v82 = vsel %vm77, %v47, 0
    %84 = vmatprep.subr.mxu0 %v49
    %85 = vmatpush1.msra.mxu0 %v48
    %86 = vmatprep.subr.mxu0 %v52
    %87 = vmatpush1.msra.mxu0 %v51
    %88 = vmatprep.subr.mxu0 %v55
    %89 = vmatpush1.msra.mxu0 %v54
    %90 = vmatprep.subr.mxu0 %v58
    %91 = vmatpush1.msra.mxu0 %v57
    %92 = vmatprep.subr.mxu0 0.0
    %93 = vmatpush1.msra.mxu0 0.0
    %94 = vmatprep.subr.mxu0 0.0
    %95 = vmatpush1.msra.mxu0 0.0
    %96 = vmatprep.subr.mxu0 0.0
    %97 = vmatpush1.msra.mxu0 0.0
    %98 = vmatprep.subr.mxu0 0.0
    %99 = vmatpush1.msra.mxu0 0.0
    %100 = vmatprep.subr.mxu0 0.0
    %101 = vmatpush1.msra.mxu0 0.0
    %102 = vmatprep.subr.mxu0 0.0
    %103 = vmatpush1.msra.mxu0 0.0
    %104 = vmatprep.subr.mxu0 0.0
    %105 = vmatpush1.msra.mxu0 0.0
    %106 = vmatprep.subr.mxu0 0.0
    %107 = vmatpush1.msra.mxu0 0.0
    %108 = vmatprep.subr.mxu0 0.0
    %109 = vmatpush1.msra.mxu0 0.0
    %110 = vmatprep.subr.mxu0 0.0
    %111 = vmatpush1.msra.mxu0 0.0
    %112 = vmatprep.subr.mxu0 0.0
    %113 = vmatpush1.msra.mxu0 0.0
    %114 = vmatprep.subr.mxu0 0.0
    %115 = vmatpush1.msra.mxu0 0.0
    %116 = vmatprep.subr.mxu0 0.0
    %117 = vmatpush1.msra.mxu0 0.0
    %118 = vmatprep.subr.mxu0 0.0
    %119 = vmatpush1.msra.mxu0 0.0
    %120 = vmatprep.subr.mxu0 0.0
    %121 = vmatpush1.msra.mxu0 0.0
    %122 = vmatprep.subr.mxu0 0.0
    %123 = vmatpush1.msra.mxu0 0.0
    %124 = vmatprep.subr.mxu0 0.0
    %125 = vmatpush1.msra.mxu0 0.0
    %126 = vmatprep.subr.mxu0 0.0
    %127 = vmatpush1.msra.mxu0 0.0
    %128 = vmatprep.subr.mxu0 0.0
    %129 = vmatpush1.msra.mxu0 0.0
    %130 = vmatprep.subr.mxu0 0.0
    %131 = vmatpush1.msra.mxu0 0.0
    %132 = vmatprep.subr.mxu0 0.0
    %133 = vmatpush1.msra.mxu0 0.0
    %134 = vmatprep.subr.mxu0 0.0
    %135 = vmatpush1.msra.mxu0 0.0
    %136 = vmatprep.subr.mxu0 0.0
    %137 = vmatpush1.msra.mxu0 0.0
    %138 = vmatprep.subr.mxu0 0.0
    %139 = vmatpush1.msra.mxu0 0.0
    %140 = vmatprep.subr.mxu0 0.0
    %141 = vmatpush1.msra.mxu0 0.0
    %142 = vmatprep.subr.mxu0 0.0
    %143 = vmatpush1.msra.mxu0 0.0
    %144 = vmatprep.subr.mxu0 0.0
    %145 = vmatpush1.msra.mxu0 0.0
    %146 = vmatprep.subr.mxu0 0.0
    %147 = vmatpush1.msra.mxu0 0.0
    %148 = vmatprep.mubr.f32.mxu0 0.0
    %149 = vmatmul.mubr.f32.gmra.mrb[0].mxu0 %v79
    %v150 = vpop.f32.mrb[0].mxu0
    %v151 = vadd.f32 %v65, %v150
    %v152 = vpop.f32.mrb[0].mxu0
    %v153 = vadd.f32 %v69, %v152
    %154 = vmatprep.mubr.f32.mxu0 0.0
    %155 = vmatmul.mubr.f32.gmra.mrb[0].mxu0 %v82
    %v156 = vpop.f32.mrb[0].mxu0
    %v157 = vadd.f32 %v65, %v156
    %v158 = vpop.f32.mrb[0].mxu0
    %v159 = vadd.f32 %v69, %v158
    %160 = vdwg.mxu0
    %161 = vmatprep.subr.mxu0 0.0
    %162 = vmatpush1.msra.mxu0 %v50
    %163 = vmatprep.subr.mxu0 0.0
    %164 = vmatpush1.msra.mxu0 %v53
    %165 = vmatprep.subr.mxu0 0.0
    %166 = vmatpush1.msra.mxu0 %v56
    %167 = vmatprep.subr.mxu0 0.0
    %168 = vmatpush1.msra.mxu0 %v59
    %169 = vmatprep.subr.mxu0 0.0
    %170 = vmatpush1.msra.mxu0 0.0
    %171 = vmatprep.subr.mxu0 0.0
    %172 = vmatpush1.msra.mxu0 0.0
    %173 = vmatprep.subr.mxu0 0.0
    %174 = vmatpush1.msra.mxu0 0.0
    %175 = vmatprep.subr.mxu0 0.0
    %176 = vmatpush1.msra.mxu0 0.0
    %177 = vmatprep.subr.mxu0 0.0
    %178 = vmatpush1.msra.mxu0 0.0
    %179 = vmatprep.subr.mxu0 0.0
    %180 = vmatpush1.msra.mxu0 0.0
    %181 = vmatprep.subr.mxu0 0.0
    %182 = vmatpush1.msra.mxu0 0.0
    %183 = vmatprep.subr.mxu0 0.0
    %184 = vmatpush1.msra.mxu0 0.0
    %185 = vmatprep.subr.mxu0 0.0
    %186 = vmatpush1.msra.mxu0 0.0
    %187 = vmatprep.subr.mxu0 0.0
    %188 = vmatpush1.msra.mxu0 0.0
    %189 = vmatprep.subr.mxu0 0.0
    %190 = vmatpush1.msra.mxu0 0.0
    %191 = vmatprep.subr.mxu0 0.0
    %192 = vmatpush1.msra.mxu0 0.0
    %193 = vmatprep.subr.mxu0 0.0
    %194 = vmatpush1.msra.mxu0 0.0
    %195 = vmatprep.subr.mxu0 0.0
    %196 = vmatpush1.msra.mxu0 0.0
    %197 = vmatprep.subr.mxu0 0.0
    %198 = vmatpush1.msra.mxu0 0.0
    %199 = vmatprep.subr.mxu0 0.0
    %200 = vmatpush1.msra.mxu0 0.0
    %201 = vmatprep.subr.mxu0 0.0
    %202 = vmatpush1.msra.mxu0 0.0
    %203 = vmatprep.subr.mxu0 0.0
    %204 = vmatpush1.msra.mxu0 0.0
    %205 = vmatprep.subr.mxu0 0.0
    %206 = vmatpush1.msra.mxu0 0.0
    %207 = vmatprep.subr.mxu0 0.0
    %208 = vmatpush1.msra.mxu0 0.0
    %209 = vmatprep.subr.mxu0 0.0
    %210 = vmatpush1.msra.mxu0 0.0
    %211 = vmatprep.subr.mxu0 0.0
    %212 = vmatpush1.msra.mxu0 0.0
    %213 = vmatprep.subr.mxu0 0.0
    %214 = vmatpush1.msra.mxu0 0.0
    %215 = vmatprep.subr.mxu0 0.0
    %216 = vmatpush1.msra.mxu0 0.0
    %217 = vmatprep.subr.mxu0 0.0
    %218 = vmatpush1.msra.mxu0 0.0
    %219 = vmatprep.subr.mxu0 0.0
    %220 = vmatpush1.msra.mxu0 0.0
    %221 = vmatprep.subr.mxu0 0.0
    %222 = vmatpush1.msra.mxu0 0.0
    %223 = vmatprep.subr.mxu0 0.0
    %224 = vmatpush1.msra.mxu0 0.0
    %225 = vmatprep.mubr.f32.mxu0 0.0
    %226 = vmatmul.mubr.f32.gmra.mrb[0].mxu0 %v79
    %v227 = vpop.f32.mrb[0].mxu0
    %v228 = vadd.f32 %v73, %v227
    %v229 = vpop.f32.mrb[0].mxu0
    %230 = vmatprep.mubr.f32.mxu0 0.0
    %231 = vmatmul.mubr.f32.gmra.mrb[0].mxu0 %v82
    %v232 = vpop.f32.mrb[0].mxu0
    %v233 = vadd.f32 %v73, %v232
    %v234 = vpop.f32.mrb[0].mxu0
    %235 = vdwg.mxu0
    %236 = vmatprep.subr.mxu0 0.0
    %237 = vmatpush1.xpose.msra.mxu0 %v153
    %238 = vmatprep.subr.mxu0 0.0
    %239 = vmatpush1.xpose.msra.mxu0 0.0
    %240 = vmatprep.subr.mxu0 0.0
    %241 = vmatpush1.xpose.msra.mxu0 0.0
    %242 = vmatprep.subr.mxu0 0.0
    %243 = vmatpush1.xpose.msra.mxu0 0.0
    %244 = vmatprep.subr.mxu0 0.0
    %245 = vmatpush1.xpose.msra.mxu0 0.0
    %246 = vmatprep.subr.mxu0 0.0
    %247 = vmatpush1.xpose.msra.mxu0 0.0
    %248 = vmatprep.subr.mxu0 0.0
    %249 = vmatpush1.xpose.msra.mxu0 0.0
    %250 = vmatprep.subr.mxu0 0.0
    %251 = vmatpush1.xpose.msra.mxu0 0.0
    %252 = vmatprep.subr.mxu0 0.0
    %253 = vmatpush1.xpose.msra.mxu0 0.0
    %254 = vmatprep.subr.mxu0 0.0
    %255 = vmatpush1.xpose.msra.mxu0 0.0
    %256 = vmatprep.subr.mxu0 0.0
    %257 = vmatpush1.xpose.msra.mxu0 0.0
    %258 = vmatprep.subr.mxu0 0.0
    %259 = vmatpush1.xpose.msra.mxu0 0.0
    %260 = vmatprep.subr.mxu0 0.0
    %261 = vmatpush1.xpose.msra.mxu0 0.0
    %262 = vmatprep.subr.mxu0 0.0
    %263 = vmatpush1.xpose.msra.mxu0 0.0
    %264 = vmatprep.subr.mxu0 0.0
    %265 = vmatpush1.xpose.msra.mxu0 0.0
    %266 = vmatprep.subr.mxu0 0.0
    %267 = vmatpush1.xpose.msra.mxu0 0.0
    %268 = vmatprep.subr.mxu0 0.0
    %269 = vmatpush1.xpose.msra.mxu0 0.0
    %270 = vmatprep.subr.mxu0 0.0
    %271 = vmatpush1.xpose.msra.mxu0 0.0
    %272 = vmatprep.subr.mxu0 0.0
    %273 = vmatpush1.xpose.msra.mxu0 0.0
    %274 = vmatprep.subr.mxu0 0.0
    %275 = vmatpush1.xpose.msra.mxu0 0.0
    %276 = vmatprep.subr.mxu0 0.0
    %277 = vmatpush1.xpose.msra.mxu0 0.0
    %278 = vmatprep.subr.mxu0 0.0
    %279 = vmatpush1.xpose.msra.mxu0 0.0
    %280 = vmatprep.subr.mxu0 0.0
    %281 = vmatpush1.xpose.msra.mxu0 0.0
    %282 = vmatprep.subr.mxu0 0.0
    %283 = vmatpush1.xpose.msra.mxu0 0.0
    %284 = vmatprep.subr.mxu0 0.0
    %285 = vmatpush1.xpose.msra.mxu0 0.0
    %286 = vmatprep.subr.mxu0 0.0
    %287 = vmatpush1.xpose.msra.mxu0 0.0
    %288 = vmatprep.subr.mxu0 0.0
    %289 = vmatpush1.xpose.msra.mxu0 0.0
    %290 = vmatprep.subr.mxu0 0.0
    %291 = vmatpush1.xpose.msra.mxu0 0.0
    %292 = vmatprep.subr.mxu0 0.0
    %293 = vmatpush1.xpose.msra.mxu0 0.0
    %294 = vmatprep.subr.mxu0 0.0
    %295 = vmatpush1.xpose.msra.mxu0 0.0
    %296 = vmatprep.subr.mxu0 0.0
    %297 = vmatpush1.xpose.msra.mxu0 0.0
    %298 = vmatprep.subr.mxu0 0.0
    %299 = vmatpush1.xpose.msra.mxu0 0.0
    %300 = vmatprep.mubr.f32.mxu0 0.0
    %301 = vmatmul.mubr.f32.gmra.mrb[0].mxu0 %v151
    %v302 = vpop.f32.mrb[0].mxu0
    %v303 = vadd.f32 0.0, %v302
    %v304 = vpop.f32.mrb[0].mxu0
    %305 = vdwg.mxu0
    %306 = vmatprep.subr.mxu0 0.0
    %307 = vmatpush1.xpose.msra.mxu0 %v159
    %308 = vmatprep.subr.mxu0 0.0
    %309 = vmatpush1.xpose.msra.mxu0 0.0
    %310 = vmatprep.subr.mxu0 0.0
    %311 = vmatpush1.xpose.msra.mxu0 0.0
    %312 = vmatprep.subr.mxu0 0.0
    %313 = vmatpush1.xpose.msra.mxu0 0.0
    %314 = vmatprep.subr.mxu0 0.0
    %315 = vmatpush1.xpose.msra.mxu0 0.0
    %316 = vmatprep.subr.mxu0 0.0
    %317 = vmatpush1.xpose.msra.mxu0 0.0
    %318 = vmatprep.subr.mxu0 0.0
    %319 = vmatpush1.xpose.msra.mxu0 0.0
    %320 = vmatprep.subr.mxu0 0.0
    %321 = vmatpush1.xpose.msra.mxu0 0.0
    %322 = vmatprep.subr.mxu0 0.0
    %323 = vmatpush1.xpose.msra.mxu0 0.0
    %324 = vmatprep.subr.mxu0 0.0
    %325 = vmatpush1.xpose.msra.mxu0 0.0
    %326 = vmatprep.subr.mxu0 0.0
    %327 = vmatpush1.xpose.msra.mxu0 0.0
    %328 = vmatprep.subr.mxu0 0.0
    %329 = vmatpush1.xpose.msra.mxu0 0.0
    %330 = vmatprep.subr.mxu0 0.0
    %331 = vmatpush1.xpose.msra.mxu0 0.0
    %332 = vmatprep.subr.mxu0 0.0
    %333 = vmatpush1.xpose.msra.mxu0 0.0
    %334 = vmatprep.subr.mxu0 0.0
    %335 = vmatpush1.xpose.msra.mxu0 0.0
    %336 = vmatprep.subr.mxu0 0.0
    %337 = vmatpush1.xpose.msra.mxu0 0.0
    %338 = vmatprep.subr.mxu0 0.0
    %339 = vmatpush1.xpose.msra.mxu0 0.0
    %340 = vmatprep.subr.mxu0 0.0
    %341 = vmatpush1.xpose.msra.mxu0 0.0
    %342 = vmatprep.subr.mxu0 0.0
    %343 = vmatpush1.xpose.msra.mxu0 0.0
    %344 = vmatprep.subr.mxu0 0.0
    %345 = vmatpush1.xpose.msra.mxu0 0.0
    %346 = vmatprep.subr.mxu0 0.0
    %347 = vmatpush1.xpose.msra.mxu0 0.0
    %348 = vmatprep.subr.mxu0 0.0
    %349 = vmatpush1.xpose.msra.mxu0 0.0
    %350 = vmatprep.subr.mxu0 0.0
    %351 = vmatpush1.xpose.msra.mxu0 0.0
    %352 = vmatprep.subr.mxu0 0.0
    %353 = vmatpush1.xpose.msra.mxu0 0.0
    %354 = vmatprep.subr.mxu0 0.0
    %355 = vmatpush1.xpose.msra.mxu0 0.0
    %356 = vmatprep.subr.mxu0 0.0
    %357 = vmatpush1.xpose.msra.mxu0 0.0
    %358 = vmatprep.subr.mxu0 0.0
    %359 = vmatpush1.xpose.msra.mxu0 0.0
    %360 = vmatprep.subr.mxu0 0.0
    %361 = vmatpush1.xpose.msra.mxu0 0.0
    %362 = vmatprep.subr.mxu0 0.0
    %363 = vmatpush1.xpose.msra.mxu0 0.0
    %364 = vmatprep.subr.mxu0 0.0
    %365 = vmatpush1.xpose.msra.mxu0 0.0
    %366 = vmatprep.subr.mxu0 0.0
    %367 = vmatpush1.xpose.msra.mxu0 0.0
    %368 = vmatprep.subr.mxu0 0.0
    %369 = vmatpush1.xpose.msra.mxu0 0.0
    %370 = vmatprep.mubr.f32.mxu0 0.0
    %371 = vmatmul.mubr.f32.gmra.mrb[0].mxu0 %v157
    %v372 = vpop.f32.mrb[0].mxu0
    %v373 = vadd.f32 0.0, %v372
    %v374 = vpop.f32.mrb[0].mxu0
    %375 = vdwg.mxu0
    %vm376 = vcmask 64512
    %v378 = vsel %vm376, %v303, 0
    %380 = vmatprep.subr.mxu0 0.0
    %381 = vmatpush1.msra.mxu0 %v228
    %382 = vmatprep.subr.mxu0 0.0
    %383 = vmatpush1.msra.mxu0 0.0
    %384 = vmatprep.subr.mxu0 0.0
    %385 = vmatpush1.msra.mxu0 0.0
    %386 = vmatprep.subr.mxu0 0.0
    %387 = vmatpush1.msra.mxu0 0.0
    %388 = vmatprep.subr.mxu0 0.0
    %389 = vmatpush1.msra.mxu0 0.0
    %390 = vmatprep.subr.mxu0 0.0
    %391 = vmatpush1.msra.mxu0 0.0
    %392 = vmatprep.subr.mxu0 0.0
    %393 = vmatpush1.msra.mxu0 0.0
    %394 = vmatprep.subr.mxu0 0.0
    %395 = vmatpush1.msra.mxu0 0.0
    %396 = vmatprep.subr.mxu0 0.0
    %397 = vmatpush1.msra.mxu0 0.0
    %398 = vmatprep.subr.mxu0 0.0
    %399 = vmatpush1.msra.mxu0 0.0
    %400 = vmatprep.subr.mxu0 0.0
    %401 = vmatpush1.msra.mxu0 0.0
    %402 = vmatprep.subr.mxu0 0.0
    %403 = vmatpush1.msra.mxu0 0.0
    %404 = vmatprep.subr.mxu0 0.0
    %405 = vmatpush1.msra.mxu0 0.0
    %406 = vmatprep.subr.mxu0 0.0
    %407 = vmatpush1.msra.mxu0 0.0
    %408 = vmatprep.subr.mxu0 0.0
    %409 = vmatpush1.msra.mxu0 0.0
    %410 = vmatprep.subr.mxu0 0.0
    %411 = vmatpush1.msra.mxu0 0.0
    %412 = vmatprep.subr.mxu0 0.0
    %413 = vmatpush1.msra.mxu0 0.0
    %414 = vmatprep.subr.mxu0 0.0
    %415 = vmatpush1.msra.mxu0 0.0
    %416 = vmatprep.subr.mxu0 0.0
    %417 = vmatpush1.msra.mxu0 0.0
    %418 = vmatprep.subr.mxu0 0.0
    %419 = vmatpush1.msra.mxu0 0.0
    %420 = vmatprep.subr.mxu0 0.0
    %421 = vmatpush1.msra.mxu0 0.0
    %422 = vmatprep.subr.mxu0 0.0
    %423 = vmatpush1.msra.mxu0 0.0
    %424 = vmatprep.subr.mxu0 0.0
    %425 = vmatpush1.msra.mxu0 0.0
    %426 = vmatprep.subr.mxu0 0.0
    %427 = vmatpush1.msra.mxu0 0.0
    %428 = vmatprep.subr.mxu0 0.0
    %429 = vmatpush1.msra.mxu0 0.0
    %430 = vmatprep.subr.mxu0 0.0
    %431 = vmatpush1.msra.mxu0 0.0
    %432 = vmatprep.subr.mxu0 0.0
    %433 = vmatpush1.msra.mxu0 0.0
    %434 = vmatprep.subr.mxu0 0.0
    %435 = vmatpush1.msra.mxu0 0.0
    %436 = vmatprep.subr.mxu0 0.0
    %437 = vmatpush1.msra.mxu0 0.0
    %438 = vmatprep.subr.mxu0 0.0
    %439 = vmatpush1.msra.mxu0 0.0
    %440 = vmatprep.subr.mxu0 0.0
    %441 = vmatpush1.msra.mxu0 0.0
    %442 = vmatprep.subr.mxu0 0.0
    %443 = vmatpush1.msra.mxu0 0.0
    %444 = vmatprep.mubr.f32.mxu0 0.0
    %445 = vmatmul.mubr.f32.gmra.mrb[0].mxu0 %v378
    %v446 = vpop.f32.mrb[0].mxu0
    %v447 = vadd.f32 0.0, %v446
    %v448 = vpop.f32.mrb[0].mxu0
    %449 = vdwg.mxu0
    %v451 = vsel %vm376, %v373, 0
    %453 = vmatprep.subr.mxu0 0.0
    %454 = vmatpush1.msra.mxu0 %v233
    %455 = vmatprep.subr.mxu0 0.0
    %456 = vmatpush1.msra.mxu0 0.0
    %457 = vmatprep.subr.mxu0 0.0
    %458 = vmatpush1.msra.mxu0 0.0
    %459 = vmatprep.subr.mxu0 0.0
    %460 = vmatpush1.msra.mxu0 0.0
    %461 = vmatprep.subr.mxu0 0.0
    %462 = vmatpush1.msra.mxu0 0.0
    %463 = vmatprep.subr.mxu0 0.0
    %464 = vmatpush1.msra.mxu0 0.0
    %465 = vmatprep.subr.mxu0 0.0
    %466 = vmatpush1.msra.mxu0 0.0
    %467 = vmatprep.subr.mxu0 0.0
    %468 = vmatpush1.msra.mxu0 0.0
    %469 = vmatprep.subr.mxu0 0.0
    %470 = vmatpush1.msra.mxu0 0.0
    %471 = vmatprep.subr.mxu0 0.0
    %472 = vmatpush1.msra.mxu0 0.0
    %473 = vmatprep.subr.mxu0 0.0
    %474 = vmatpush1.msra.mxu0 0.0
    %475 = vmatprep.subr.mxu0 0.0
    %476 = vmatpush1.msra.mxu0 0.0
    %477 = vmatprep.subr.mxu0 0.0
    %478 = vmatpush1.msra.mxu0 0.0
    %479 = vmatprep.subr.mxu0 0.0
    %480 = vmatpush1.msra.mxu0 0.0
    %481 = vmatprep.subr.mxu0 0.0
    %482 = vmatpush1.msra.mxu0 0.0
    %483 = vmatprep.subr.mxu0 0.0
    %484 = vmatpush1.msra.mxu0 0.0
    %485 = vmatprep.subr.mxu0 0.0
    %486 = vmatpush1.msra.mxu0 0.0
    %487 = vmatprep.subr.mxu0 0.0
    %488 = vmatpush1.msra.mxu0 0.0
    %489 = vmatprep.subr.mxu0 0.0
    %490 = vmatpush1.msra.mxu0 0.0
    %491 = vmatprep.subr.mxu0 0.0
    %492 = vmatpush1.msra.mxu0 0.0
    %493 = vmatprep.subr.mxu0 0.0
    %494 = vmatpush1.msra.mxu0 0.0
    %495 = vmatprep.subr.mxu0 0.0
    %496 = vmatpush1.msra.mxu0 0.0
    %497 = vmatprep.subr.mxu0 0.0
    %498 = vmatpush1.msra.mxu0 0.0
    %499 = vmatprep.subr.mxu0 0.0
    %500 = vmatpush1.msra.mxu0 0.0
    %501 = vmatprep.subr.mxu0 0.0
    %502 = vmatpush1.msra.mxu0 0.0
    %503 = vmatprep.subr.mxu0 0.0
    %504 = vmatpush1.msra.mxu0 0.0
    %505 = vmatprep.subr.mxu0 0.0
    %506 = vmatpush1.msra.mxu0 0.0
    %507 = vmatprep.subr.mxu0 0.0
    %508 = vmatpush1.msra.mxu0 0.0
    %509 = vmatprep.subr.mxu0 0.0
    %510 = vmatpush1.msra.mxu0 0.0
    %511 = vmatprep.subr.mxu0 0.0
    %512 = vmatpush1.msra.mxu0 0.0
    %513 = vmatprep.subr.mxu0 0.0
    %514 = vmatpush1.msra.mxu0 0.0
    %515 = vmatprep.subr.mxu0 0.0
    %516 = vmatpush1.msra.mxu0 0.0
    %517 = vmatprep.mubr.f32.mxu0 0.0
    %518 = vmatmul.mubr.f32.gmra.mrb[0].mxu0 %v451
    %v519 = vpop.f32.mrb[0].mxu0
    %v520 = vadd.f32 0.0, %v519
    %v521 = vpop.f32.mrb[0].mxu0
    %522 = vdwg.mxu0
    %v523 = vld [vmem:[%s3] sm:$0x1]
    %v525 = vlaneseq
    %v526 = vshrl.u32 %v525, 7
    %v527 = vsub.s32 0, %v526
    %v528 = vrot.slane %v523, %v527
    %v530 = vadd.f32 %v447, %v528
    %v531 = vadd.f32 %v520, %v528
    %532 = vst [vmem:[#allocation7] sm:$0xff] %v530
    %533 = vst [vmem:[#allocation7 + $0x8] sm:$0xff] %v531
    // Predicated region
    $region26: #{tpu_custom_call.1} parent=1 // pred_check
      _
    $region27: #{tpu_custom_call.1} parent=1 // pred_check_branch
      %535 = sbr.rel (0) target = $region29
    $region28: #{tpu_custom_call.1} parent=1 // pred_region
      %s537 = ssub.s32 256, 256
      %538 = vsyncadd [#allocation4], %s537
      %s539 = sshll.u32 [#allocation7], 4
      %s540 = int_to_ptr.vmem [resolvable:$true] %s539
      %545 = dma.vmem_to_hbm [thread:$0]  %s540, 256, %s4, [#allocation4], 128, 128, 8
    $region29: #{tpu_custom_call.1} parent=1 // pred_fallthru
      _
    // Predicated region
    $region30: #{tpu_custom_call.1} parent=1 // pred_check
      _
    $region31: #{tpu_custom_call.1} parent=1 // pred_check_branch
      %547 = sbr.rel (0) target = $region33
    $region32: #{tpu_custom_call.1} parent=1 // pred_region
      %548 = dma.done [#allocation4], 256
    $region33: #{tpu_custom_call.1} parent=1 // pred_fallthru
      _
    %549 = vsyncpa [#allocation3], 1
    %550 = vsyncpa [#allocation6], 1
    %551 = vsyncpa [#allocation4], 1

</llo_original>
